<compile_context>
chip_gen: v5e
topology: v5e:2x2
jax: 0.10.0
libtpu: 0.0.40
codegen_flags: <defaults>
</compile_context>

<pallas_src>
import functools

import jax
import jax.numpy as jnp
from jax.experimental import pallas as pl
from jax.experimental.pallas import tpu as pltpu


def _value_network2_kernel(
    x_ref,       # (B*H, D)   joint state, rows batch-major (row = b*H + t)
    self_ref,    # (B, SDIM)  self state (row 0 of each sequence, first SDIM feats)
    w1a_ref, w1b_ref,          # mlp1:  (D, F1a), (F1a, F1)
    wih_ref, whh_ref,          # LSTM:  (F1, 4*HID), (HID, 4*HID)
    w2s_ref, w2h_ref,          # mlp layer 0 split: (SDIM, M1), (HID, M1)
    w2b_ref, w2c_ref,          # mlp layers 1/2: (M1, M2), (M2, OUT)
    bias_ref,    # (6, Wmax)  packed biases: rows = b1a, b1b, b_lstm, b2a, b2b, b2c
    out_ref,     # (B, OUT)
):
    B = self_ref.shape[0]
    H = x_ref.shape[0] // B
    hid = whh_ref.shape[0]

    F1a = w1a_ref.shape[1]
    F1 = w1b_ref.shape[1]
    G4 = wih_ref.shape[1]          # 4 * hid
    M1 = w2s_ref.shape[1]
    M2 = w2b_ref.shape[1]
    OUT = w2c_ref.shape[1]

    # Unpack the packed bias buffer (static slices, loaded once).
    b1a = bias_ref[0:1, 0:F1a]
    b1b = bias_ref[1:2, 0:F1]
    bl = bias_ref[2:3, 0:G4]
    b2a = bias_ref[3:4, 0:M1]
    b2b = bias_ref[4:5, 0:M2]
    b2c = bias_ref[5:6, 0:OUT]

    # ---- hoisted, loop-invariant work: mlp1 + input-to-gate projection ------
    x = x_ref[...]                                              # (B*H, D)
    m1 = jnp.maximum(
        jnp.dot(x, w1a_ref[...], preferred_element_type=jnp.float32) + b1a, 0.0)
    m1 = jnp.dot(m1, w1b_ref[...], preferred_element_type=jnp.float32) + b1b
    gates_x = (jnp.dot(m1, wih_ref[...], preferred_element_type=jnp.float32)
               + bl)                                            # (B*H, 4*hid)

    # Regroup the per-timestep gate inputs into (B, 4*hid) blocks once, outside
    # the recurrence (rows for timestep t are {b*H + t}).  Fine for small
    # static B; for large B, grid over batch tiles instead.
    g_steps = [
        jnp.concatenate(
            [gates_x[b * H + t:b * H + t + 1, :] for b in range(B)], axis=0)
        for t in range(H)
    ]

    # Lane mask selecting the tanh ("g") gate; PyTorch gate order is i, f, g, o.
    lane = jax.lax.broadcasted_iota(jnp.int32, (B, G4), 1)
    is_g = jnp.logical_and(lane >= 2 * hid, lane < 3 * hid)

    whh = whh_ref[...]

    # ---- serial recurrence: only h @ whh + elementwise per step -------------
    h = jnp.zeros((B, hid), jnp.float32)
    c = jnp.zeros((B, hid), jnp.float32)
    for t in range(H):                       # H is small & static: full unroll
        gates = g_steps[t] + jnp.dot(h, whh, preferred_element_type=jnp.float32)
        # Full-width EUP passes + lane-mask select instead of 4 narrow slices.
        act = jnp.where(is_g, jnp.tanh(gates), jax.nn.sigmoid(gates))
        i_g = act[:, 0 * hid:1 * hid]
        f_g = act[:, 1 * hid:2 * hid]
        g_g = act[:, 2 * hid:3 * hid]
        o_g = act[:, 3 * hid:4 * hid]
        c = f_g * c + i_g * g_g
        h = o_g * jnp.tanh(c)

    # ---- mlp on concat([self_state, hn]) — fused via split first-layer weight
    j1 = jnp.maximum(
        jnp.dot(self_ref[...], w2s_ref[...], preferred_element_type=jnp.float32)
        + jnp.dot(h, w2h_ref[...], preferred_element_type=jnp.float32)
        + b2a, 0.0)
    j2 = jnp.maximum(
        jnp.dot(j1, w2b_ref[...], preferred_element_type=jnp.float32) + b2b, 0.0)
    out_ref[...] = (
        jnp.dot(j2, w2c_ref[...], preferred_element_type=jnp.float32) + b2c)


def value_network2_forward(state, kparams, self_state_dim):
    """state: (B, H, D) float32, batch-first like the PyTorch module."""
    B, H, D = state.shape
    x_flat = state.reshape(B * H, D)              # free row-major reshape (no HBM transpose)
    self_state = state[:, 0, :self_state_dim]     # (B, SDIM)  tiny glue slice

    (w1a, w1b, wih, whh, w2s, w2h, w2b, w2c, bias_pack) = kparams
    out_dim = w2c.shape[1]

    vmem = pl.BlockSpec(memory_space=pltpu.MemorySpace.VMEM)
    return pl.pallas_call(
        _value_network2_kernel,
        out_shape=jax.ShapeDtypeStruct((B, out_dim), jnp.float32),
        in_specs=[vmem] * 11,
        out_specs=vmem,
    )(x_flat, self_state, w1a, w1b, wih, whh, w2s, w2h, w2b, w2c, bias_pack)


def _reference_forward(state, params, self_state_dim):
    """Pure-JAX reference matching the PyTorch semantics (for validation)."""
    (w1a, b1a, w1b, b1b, wih, whh, bl,
     w2s, w2h, b2a, w2b, b2b, w2c, b2c) = params
    B, H, D = state.shape
    hid = whh.shape[0]
    self_state = state[:, 0, :self_state_dim]
    flat = state.reshape(-1, D)
    m1 = jnp.maximum(flat @ w1a + b1a, 0.0)
    m1 = m1 @ w1b + b1b
    m1 = m1.reshape(B, H, -1)

    h = jnp.zeros((B, hid), jnp.float32)
    c = jnp.zeros((B, hid), jnp.float32)
    for t in range(H):
        x_t = m1[:, t, :]
        gates = x_t @ wih + h @ whh + bl
        i_g = jax.nn.sigmoid(gates[:, 0 * hid:1 * hid])
        f_g = jax.nn.sigmoid(gates[:, 1 * hid:2 * hid])
        g_g = jnp.tanh(gates[:, 2 * hid:3 * hid])
        o_g = jax.nn.sigmoid(gates[:, 3 * hid:4 * hid])
        c = f_g * c + i_g * g_g
        h = o_g * jnp.tanh(c)

    j = jnp.concatenate([self_state, h], axis=1)
    j1 = jnp.maximum(j @ jnp.concatenate([w2s, w2h], axis=0) + b2a, 0.0)
    j2 = jnp.maximum(j1 @ w2b + b2b, 0.0)
    return j2 @ w2c + b2c


def make_params(key, input_dim, self_state_dim, mlp1_dims, mlp_dims, lstm_hidden_dim):
    """Deterministic synthetic weights. All linear weights stored as (in, out)."""
    ks = jax.random.split(key, 16)
    F1 = mlp1_dims[-1]
    M1, M2, OUT = mlp_dims[0], mlp_dims[1], mlp_dims[2]
    hid = lstm_hidden_dim
    sdim = self_state_dim

    def u(k, shape, scale=0.2):
        return jax.random.uniform(k, shape, jnp.float32, -scale, scale)

    # mlp1: Linear(input_dim, F1a) + ReLU, Linear(F1a, F1)   (no final ReLU)
    w1a = u(ks[0], (input_dim, mlp1_dims[0]))
    b1a = u(ks[1], (1, mlp1_dims[0]))
    w1b = u(ks[2], (mlp1_dims[0], F1))
    b1b = u(ks[3], (1, F1))

    # LSTM(F1 -> hid); combined bias (b_ih + b_hh), gate order i, f, g, o.
    wih = u(ks[4], (F1, 4 * hid))
    whh = u(ks[5], (hid, 4 * hid))
    bl = u(ks[6], (1, 4 * hid))

    # mlp: Linear(sdim+hid, M1)+ReLU, Linear(M1, M2)+ReLU, Linear(M2, OUT)
    w2_full = u(ks[7], (sdim + hid, M1))
    w2s, w2h = w2_full[:sdim], w2_full[sdim:]
    b2a = u(ks[8], (1, M1))
    w2b = u(ks[9], (M1, M2))
    b2b = u(ks[10], (1, M2))
    w2c = u(ks[11], (M2, OUT))
    b2c = u(ks[12], (1, OUT))

    return (w1a, b1a, w1b, b1b, wih, whh, bl,
            w2s, w2h, b2a, w2b, b2b, w2c, b2c)


def pack_params(params):
    """One-time repack: keep weights as-is, fuse the 6 tiny biases into one buffer."""
    (w1a, b1a, w1b, b1b, wih, whh, bl,
     w2s, w2h, b2a, w2b, b2b, w2c, b2c) = params
    biases = [b1a, b1b, bl, b2a, b2b, b2c]
    wmax = max(b.shape[1] for b in biases)
    bias_pack = jnp.stack(
        [jnp.pad(b[0], (0, wmax - b.shape[1])) for b in biases], axis=0)  # (6, Wmax)
    return (w1a, w1b, wih, whh, w2s, w2h, w2b, w2c, bias_pack)


if __name__ == "__main__":
    # Small shapes consistent with crowd_nav's joint state:
    #   batch=2, humans(seq)=5, joint-state length=13, self_state_dim=6
    B, H, D = 2, 5, 13
    self_state_dim = 6
    mlp1_dims = [32, 32]
    mlp_dims = [32, 32, 1]
    lstm_hidden_dim = 32

    key = jax.random.PRNGKey(0)
    k_state, k_params = jax.random.split(key)
    state = jax.random.normal(k_state, (B, H, D), jnp.float32)
    params = make_params(k_params, D, self_state_dim, mlp1_dims, mlp_dims,
                         lstm_hidden_dim)
    kparams = pack_params(params)   # packed-bias layout consumed by the kernel

    fwd = jax.jit(functools.partial(value_network2_forward,
                                    self_state_dim=self_state_dim))
    value = fwd(state, kparams)
    value = jax.block_until_ready(value)

    ref = _reference_forward(state, params, self_state_dim)
    assert value.shape == (B, 1)
    assert jnp.allclose(value, ref, atol=1e-4, rtol=1e-4), (value, ref)

    print("KERNEL_OK")
</pallas_src>

<mosaic_0001>
module attributes {stable_mosaic.version = 11 : i64} {
  func.func @_value_network2_kernel(%arg0: memref<10x13xf32, #tpu.memory_space<vmem>>, %arg1: memref<2x6xf32, #tpu.memory_space<vmem>>, %arg2: memref<13x32xf32, #tpu.memory_space<vmem>>, %arg3: memref<32x32xf32, #tpu.memory_space<vmem>>, %arg4: memref<32x128xf32, #tpu.memory_space<vmem>>, %arg5: memref<32x128xf32, #tpu.memory_space<vmem>>, %arg6: memref<6x32xf32, #tpu.memory_space<vmem>>, %arg7: memref<32x32xf32, #tpu.memory_space<vmem>>, %arg8: memref<32x32xf32, #tpu.memory_space<vmem>>, %arg9: memref<32x1xf32, #tpu.memory_space<vmem>>, %arg10: memref<6x128xf32, #tpu.memory_space<vmem>>, %arg11: memref<2x1xf32, #tpu.memory_space<vmem>>) attributes {dimension_semantics = [], scalar_prefetch = 0 : i64, scratch_operands = 0 : i64, tpu.core_type = #tpu.core_type<tc>} {
    %c0 = arith.constant 0 : index
    %c0_0 = arith.constant 0 : index
    %0 = vector.load %arg10[%c0, %c0_0] : memref<6x128xf32, #tpu.memory_space<vmem>>, vector<1x32xf32>
    %c1 = arith.constant 1 : index
    %c0_1 = arith.constant 0 : index
    %1 = vector.load %arg10[%c1, %c0_1] : memref<6x128xf32, #tpu.memory_space<vmem>>, vector<1x32xf32>
    %c2 = arith.constant 2 : index
    %c0_2 = arith.constant 0 : index
    %2 = vector.load %arg10[%c2, %c0_2] : memref<6x128xf32, #tpu.memory_space<vmem>>, vector<1x128xf32>
    %c3 = arith.constant 3 : index
    %c0_3 = arith.constant 0 : index
    %3 = vector.load %arg10[%c3, %c0_3] : memref<6x128xf32, #tpu.memory_space<vmem>>, vector<1x32xf32>
    %c4 = arith.constant 4 : index
    %c0_4 = arith.constant 0 : index
    %4 = vector.load %arg10[%c4, %c0_4] : memref<6x128xf32, #tpu.memory_space<vmem>>, vector<1x32xf32>
    %c5 = arith.constant 5 : index
    %c0_5 = arith.constant 0 : index
    %5 = vector.load %arg10[%c5, %c0_5] : memref<6x128xf32, #tpu.memory_space<vmem>>, vector<1x1xf32>
    %c0_6 = arith.constant 0 : index
    %c0_7 = arith.constant 0 : index
    %6 = vector.load %arg0[%c0_6, %c0_7] : memref<10x13xf32, #tpu.memory_space<vmem>>, vector<10x13xf32>
    %c0_8 = arith.constant 0 : index
    %c0_9 = arith.constant 0 : index
    %7 = vector.load %arg2[%c0_8, %c0_9] : memref<13x32xf32, #tpu.memory_space<vmem>>, vector<13x32xf32>
    %cst = arith.constant dense<0.000000e+00> : vector<10x32xf32>
    %8 = tpu.matmul %6, %7, %cst {dimension_numbers = #tpu.dot_dimension_numbers<[1], [0], [0], [1], [0, 0, 1, 1], [], []>} : vector<10x13xf32>, vector<13x32xf32>, vector<10x32xf32> -> vector<10x32xf32>
    %9 = vector.broadcast %0 : vector<1x32xf32> to vector<10x32xf32>
    %10 = arith.addf %8, %9 : vector<10x32xf32>
    %cst_10 = arith.constant 0.000000e+00 : f32
    %11 = vector.broadcast %cst_10 : f32 to vector<10x32xf32>
    %12 = arith.maximumf %10, %11 : vector<10x32xf32>
    %c0_11 = arith.constant 0 : index
    %c0_12 = arith.constant 0 : index
    %13 = vector.load %arg3[%c0_11, %c0_12] : memref<32x32xf32, #tpu.memory_space<vmem>>, vector<32x32xf32>
    %cst_13 = arith.constant dense<0.000000e+00> : vector<10x32xf32>
    %14 = tpu.matmul %12, %13, %cst_13 {dimension_numbers = #tpu.dot_dimension_numbers<[1], [0], [0], [1], [0, 0, 1, 1], [], []>} : vector<10x32xf32>, vector<32x32xf32>, vector<10x32xf32> -> vector<10x32xf32>
    %15 = vector.broadcast %1 : vector<1x32xf32> to vector<10x32xf32>
    %16 = arith.addf %14, %15 : vector<10x32xf32>
    %c0_14 = arith.constant 0 : index
    %c0_15 = arith.constant 0 : index
    %17 = vector.load %arg4[%c0_14, %c0_15] : memref<32x128xf32, #tpu.memory_space<vmem>>, vector<32x128xf32>
    %cst_16 = arith.constant dense<0.000000e+00> : vector<10x128xf32>
    %18 = tpu.matmul %16, %17, %cst_16 {dimension_numbers = #tpu.dot_dimension_numbers<[1], [0], [0], [1], [0, 0, 1, 1], [], []>} : vector<10x32xf32>, vector<32x128xf32>, vector<10x128xf32> -> vector<10x128xf32>
    %19 = vector.broadcast %2 : vector<1x128xf32> to vector<10x128xf32>
    %20 = arith.addf %18, %19 : vector<10x128xf32>
    %21 = vector.extract_strided_slice %20 {offsets = [0, 0], sizes = [1, 128], strides = [1, 1]} : vector<10x128xf32> to vector<1x128xf32>
    %22 = vector.extract_strided_slice %20 {offsets = [5, 0], sizes = [1, 128], strides = [1, 1]} : vector<10x128xf32> to vector<1x128xf32>
    %23 = tpu.concatenate %21, %22 in 0 : vector<1x128xf32>, vector<1x128xf32> -> vector<2x128xf32>
    %24 = vector.extract_strided_slice %20 {offsets = [1, 0], sizes = [1, 128], strides = [1, 1]} : vector<10x128xf32> to vector<1x128xf32>
    %25 = vector.extract_strided_slice %20 {offsets = [6, 0], sizes = [1, 128], strides = [1, 1]} : vector<10x128xf32> to vector<1x128xf32>
    %26 = tpu.concatenate %24, %25 in 0 : vector<1x128xf32>, vector<1x128xf32> -> vector<2x128xf32>
    %27 = vector.extract_strided_slice %20 {offsets = [2, 0], sizes = [1, 128], strides = [1, 1]} : vector<10x128xf32> to vector<1x128xf32>
    %28 = vector.extract_strided_slice %20 {offsets = [7, 0], sizes = [1, 128], strides = [1, 1]} : vector<10x128xf32> to vector<1x128xf32>
    %29 = tpu.concatenate %27, %28 in 0 : vector<1x128xf32>, vector<1x128xf32> -> vector<2x128xf32>
    %30 = vector.extract_strided_slice %20 {offsets = [3, 0], sizes = [1, 128], strides = [1, 1]} : vector<10x128xf32> to vector<1x128xf32>
    %31 = vector.extract_strided_slice %20 {offsets = [8, 0], sizes = [1, 128], strides = [1, 1]} : vector<10x128xf32> to vector<1x128xf32>
    %32 = tpu.concatenate %30, %31 in 0 : vector<1x128xf32>, vector<1x128xf32> -> vector<2x128xf32>
    %33 = vector.extract_strided_slice %20 {offsets = [4, 0], sizes = [1, 128], strides = [1, 1]} : vector<10x128xf32> to vector<1x128xf32>
    %34 = vector.extract_strided_slice %20 {offsets = [9, 0], sizes = [1, 128], strides = [1, 1]} : vector<10x128xf32> to vector<1x128xf32>
    %35 = tpu.concatenate %33, %34 in 0 : vector<1x128xf32>, vector<1x128xf32> -> vector<2x128xf32>
    %36 = tpu.iota {dimensions = array<i32: 1>} : vector<2x128xi32>
    %c64_i32 = arith.constant 64 : i32
    %37 = vector.broadcast %c64_i32 : i32 to vector<2x128xi32>
    %38 = arith.cmpi sge, %36, %37 : vector<2x128xi32>
    %c96_i32 = arith.constant 96 : i32
    %39 = vector.broadcast %c96_i32 : i32 to vector<2x128xi32>
    %40 = arith.cmpi slt, %36, %39 : vector<2x128xi32>
    %41 = arith.andi %38, %40 : vector<2x128xi1>
    %c0_17 = arith.constant 0 : index
    %c0_18 = arith.constant 0 : index
    %42 = vector.load %arg5[%c0_17, %c0_18] : memref<32x128xf32, #tpu.memory_space<vmem>>, vector<32x128xf32>
    %cst_19 = arith.constant 0.000000e+00 : f32
    %43 = vector.broadcast %cst_19 : f32 to vector<2x32xf32>
    %cst_20 = arith.constant 0.000000e+00 : f32
    %44 = vector.broadcast %cst_20 : f32 to vector<2x32xf32>
    %cst_21 = arith.constant dense<0.000000e+00> : vector<2x128xf32>
    %45 = tpu.matmul %43, %42, %cst_21 {dimension_numbers = #tpu.dot_dimension_numbers<[1], [0], [0], [1], [0, 0, 1, 1], [], []>} : vector<2x32xf32>, vector<32x128xf32>, vector<2x128xf32> -> vector<2x128xf32>
    %46 = arith.addf %23, %45 : vector<2x128xf32>
    %47 = math.tanh %46 : vector<2x128xf32>
    %48 = arith.negf %46 : vector<2x128xf32>
    %49 = math.exp %48 : vector<2x128xf32>
    %cst_22 = arith.constant 1.000000e+00 : f32
    %50 = vector.broadcast %cst_22 : f32 to vector<2x128xf32>
    %51 = arith.addf %50, %49 : vector<2x128xf32>
    %52 = arith.divf %50, %51 : vector<2x128xf32>
    %53 = arith.select %41, %47, %52 : vector<2x128xi1>, vector<2x128xf32>
    %54 = vector.extract_strided_slice %53 {offsets = [0, 0], sizes = [2, 32], strides = [1, 1]} : vector<2x128xf32> to vector<2x32xf32>
    %55 = vector.extract_strided_slice %53 {offsets = [0, 32], sizes = [2, 32], strides = [1, 1]} : vector<2x128xf32> to vector<2x32xf32>
    %56 = vector.extract_strided_slice %53 {offsets = [0, 64], sizes = [2, 32], strides = [1, 1]} : vector<2x128xf32> to vector<2x32xf32>
    %57 = vector.extract_strided_slice %53 {offsets = [0, 96], sizes = [2, 32], strides = [1, 1]} : vector<2x128xf32> to vector<2x32xf32>
    %58 = arith.mulf %55, %44 : vector<2x32xf32>
    %59 = arith.mulf %54, %56 : vector<2x32xf32>
    %60 = arith.addf %58, %59 : vector<2x32xf32>
    %61 = math.tanh %60 : vector<2x32xf32>
    %62 = arith.mulf %57, %61 : vector<2x32xf32>
    %cst_23 = arith.constant dense<0.000000e+00> : vector<2x128xf32>
    %63 = tpu.matmul %62, %42, %cst_23 {dimension_numbers = #tpu.dot_dimension_numbers<[1], [0], [0], [1], [0, 0, 1, 1], [], []>} : vector<2x32xf32>, vector<32x128xf32>, vector<2x128xf32> -> vector<2x128xf32>
    %64 = arith.addf %26, %63 : vector<2x128xf32>
    %65 = math.tanh %64 : vector<2x128xf32>
    %66 = arith.negf %64 : vector<2x128xf32>
    %67 = math.exp %66 : vector<2x128xf32>
    %cst_24 = arith.constant 1.000000e+00 : f32
    %68 = vector.broadcast %cst_24 : f32 to vector<2x128xf32>
    %69 = arith.addf %68, %67 : vector<2x128xf32>
    %70 = arith.divf %68, %69 : vector<2x128xf32>
    %71 = arith.select %41, %65, %70 : vector<2x128xi1>, vector<2x128xf32>
    %72 = vector.extract_strided_slice %71 {offsets = [0, 0], sizes = [2, 32], strides = [1, 1]} : vector<2x128xf32> to vector<2x32xf32>
    %73 = vector.extract_strided_slice %71 {offsets = [0, 32], sizes = [2, 32], strides = [1, 1]} : vector<2x128xf32> to vector<2x32xf32>
    %74 = vector.extract_strided_slice %71 {offsets = [0, 64], sizes = [2, 32], strides = [1, 1]} : vector<2x128xf32> to vector<2x32xf32>
    %75 = vector.extract_strided_slice %71 {offsets = [0, 96], sizes = [2, 32], strides = [1, 1]} : vector<2x128xf32> to vector<2x32xf32>
    %76 = arith.mulf %73, %60 : vector<2x32xf32>
    %77 = arith.mulf %72, %74 : vector<2x32xf32>
    %78 = arith.addf %76, %77 : vector<2x32xf32>
    %79 = math.tanh %78 : vector<2x32xf32>
    %80 = arith.mulf %75, %79 : vector<2x32xf32>
    %cst_25 = arith.constant dense<0.000000e+00> : vector<2x128xf32>
    %81 = tpu.matmul %80, %42, %cst_25 {dimension_numbers = #tpu.dot_dimension_numbers<[1], [0], [0], [1], [0, 0, 1, 1], [], []>} : vector<2x32xf32>, vector<32x128xf32>, vector<2x128xf32> -> vector<2x128xf32>
    %82 = arith.addf %29, %81 : vector<2x128xf32>
    %83 = math.tanh %82 : vector<2x128xf32>
    %84 = arith.negf %82 : vector<2x128xf32>
    %85 = math.exp %84 : vector<2x128xf32>
    %cst_26 = arith.constant 1.000000e+00 : f32
    %86 = vector.broadcast %cst_26 : f32 to vector<2x128xf32>
    %87 = arith.addf %86, %85 : vector<2x128xf32>
    %88 = arith.divf %86, %87 : vector<2x128xf32>
    %89 = arith.select %41, %83, %88 : vector<2x128xi1>, vector<2x128xf32>
    %90 = vector.extract_strided_slice %89 {offsets = [0, 0], sizes = [2, 32], strides = [1, 1]} : vector<2x128xf32> to vector<2x32xf32>
    %91 = vector.extract_strided_slice %89 {offsets = [0, 32], sizes = [2, 32], strides = [1, 1]} : vector<2x128xf32> to vector<2x32xf32>
    %92 = vector.extract_strided_slice %89 {offsets = [0, 64], sizes = [2, 32], strides = [1, 1]} : vector<2x128xf32> to vector<2x32xf32>
    %93 = vector.extract_strided_slice %89 {offsets = [0, 96], sizes = [2, 32], strides = [1, 1]} : vector<2x128xf32> to vector<2x32xf32>
    %94 = arith.mulf %91, %78 : vector<2x32xf32>
    %95 = arith.mulf %90, %92 : vector<2x32xf32>
    %96 = arith.addf %94, %95 : vector<2x32xf32>
    %97 = math.tanh %96 : vector<2x32xf32>
    %98 = arith.mulf %93, %97 : vector<2x32xf32>
    %cst_27 = arith.constant dense<0.000000e+00> : vector<2x128xf32>
    %99 = tpu.matmul %98, %42, %cst_27 {dimension_numbers = #tpu.dot_dimension_numbers<[1], [0], [0], [1], [0, 0, 1, 1], [], []>} : vector<2x32xf32>, vector<32x128xf32>, vector<2x128xf32> -> vector<2x128xf32>
    %100 = arith.addf %32, %99 : vector<2x128xf32>
    %101 = math.tanh %100 : vector<2x128xf32>
    %102 = arith.negf %100 : vector<2x128xf32>
    %103 = math.exp %102 : vector<2x128xf32>
    %cst_28 = arith.constant 1.000000e+00 : f32
    %104 = vector.broadcast %cst_28 : f32 to vector<2x128xf32>
    %105 = arith.addf %104, %103 : vector<2x128xf32>
    %106 = arith.divf %104, %105 : vector<2x128xf32>
    %107 = arith.select %41, %101, %106 : vector<2x128xi1>, vector<2x128xf32>
    %108 = vector.extract_strided_slice %107 {offsets = [0, 0], sizes = [2, 32], strides = [1, 1]} : vector<2x128xf32> to vector<2x32xf32>
    %109 = vector.extract_strided_slice %107 {offsets = [0, 32], sizes = [2, 32], strides = [1, 1]} : vector<2x128xf32> to vector<2x32xf32>
    %110 = vector.extract_strided_slice %107 {offsets = [0, 64], sizes = [2, 32], strides = [1, 1]} : vector<2x128xf32> to vector<2x32xf32>
    %111 = vector.extract_strided_slice %107 {offsets = [0, 96], sizes = [2, 32], strides = [1, 1]} : vector<2x128xf32> to vector<2x32xf32>
    %112 = arith.mulf %109, %96 : vector<2x32xf32>
    %113 = arith.mulf %108, %110 : vector<2x32xf32>
    %114 = arith.addf %112, %113 : vector<2x32xf32>
    %115 = math.tanh %114 : vector<2x32xf32>
    %116 = arith.mulf %111, %115 : vector<2x32xf32>
    %cst_29 = arith.constant dense<0.000000e+00> : vector<2x128xf32>
    %117 = tpu.matmul %116, %42, %cst_29 {dimension_numbers = #tpu.dot_dimension_numbers<[1], [0], [0], [1], [0, 0, 1, 1], [], []>} : vector<2x32xf32>, vector<32x128xf32>, vector<2x128xf32> -> vector<2x128xf32>
    %118 = arith.addf %35, %117 : vector<2x128xf32>
    %119 = math.tanh %118 : vector<2x128xf32>
    %120 = arith.negf %118 : vector<2x128xf32>
    %121 = math.exp %120 : vector<2x128xf32>
    %cst_30 = arith.constant 1.000000e+00 : f32
    %122 = vector.broadcast %cst_30 : f32 to vector<2x128xf32>
    %123 = arith.addf %122, %121 : vector<2x128xf32>
    %124 = arith.divf %122, %123 : vector<2x128xf32>
    %125 = arith.select %41, %119, %124 : vector<2x128xi1>, vector<2x128xf32>
    %126 = vector.extract_strided_slice %125 {offsets = [0, 0], sizes = [2, 32], strides = [1, 1]} : vector<2x128xf32> to vector<2x32xf32>
    %127 = vector.extract_strided_slice %125 {offsets = [0, 32], sizes = [2, 32], strides = [1, 1]} : vector<2x128xf32> to vector<2x32xf32>
    %128 = vector.extract_strided_slice %125 {offsets = [0, 64], sizes = [2, 32], strides = [1, 1]} : vector<2x128xf32> to vector<2x32xf32>
    %129 = vector.extract_strided_slice %125 {offsets = [0, 96], sizes = [2, 32], strides = [1, 1]} : vector<2x128xf32> to vector<2x32xf32>
    %130 = arith.mulf %127, %114 : vector<2x32xf32>
    %131 = arith.mulf %126, %128 : vector<2x32xf32>
    %132 = arith.addf %130, %131 : vector<2x32xf32>
    %133 = math.tanh %132 : vector<2x32xf32>
    %134 = arith.mulf %129, %133 : vector<2x32xf32>
    %c0_31 = arith.constant 0 : index
    %c0_32 = arith.constant 0 : index
    %135 = vector.load %arg1[%c0_31, %c0_32] : memref<2x6xf32, #tpu.memory_space<vmem>>, vector<2x6xf32>
    %c0_33 = arith.constant 0 : index
    %c0_34 = arith.constant 0 : index
    %136 = vector.load %arg6[%c0_33, %c0_34] : memref<6x32xf32, #tpu.memory_space<vmem>>, vector<6x32xf32>
    %cst_35 = arith.constant dense<0.000000e+00> : vector<2x32xf32>
    %137 = tpu.matmul %135, %136, %cst_35 {dimension_numbers = #tpu.dot_dimension_numbers<[1], [0], [0], [1], [0, 0, 1, 1], [], []>} : vector<2x6xf32>, vector<6x32xf32>, vector<2x32xf32> -> vector<2x32xf32>
    %c0_36 = arith.constant 0 : index
    %c0_37 = arith.constant 0 : index
    %138 = vector.load %arg7[%c0_36, %c0_37] : memref<32x32xf32, #tpu.memory_space<vmem>>, vector<32x32xf32>
    %cst_38 = arith.constant dense<0.000000e+00> : vector<2x32xf32>
    %139 = tpu.matmul %134, %138, %cst_38 {dimension_numbers = #tpu.dot_dimension_numbers<[1], [0], [0], [1], [0, 0, 1, 1], [], []>} : vector<2x32xf32>, vector<32x32xf32>, vector<2x32xf32> -> vector<2x32xf32>
    %140 = arith.addf %137, %139 : vector<2x32xf32>
    %141 = vector.broadcast %3 : vector<1x32xf32> to vector<2x32xf32>
    %142 = arith.addf %140, %141 : vector<2x32xf32>
    %cst_39 = arith.constant 0.000000e+00 : f32
    %143 = vector.broadcast %cst_39 : f32 to vector<2x32xf32>
    %144 = arith.maximumf %142, %143 : vector<2x32xf32>
    %c0_40 = arith.constant 0 : index
    %c0_41 = arith.constant 0 : index
    %145 = vector.load %arg8[%c0_40, %c0_41] : memref<32x32xf32, #tpu.memory_space<vmem>>, vector<32x32xf32>
    %cst_42 = arith.constant dense<0.000000e+00> : vector<2x32xf32>
    %146 = tpu.matmul %144, %145, %cst_42 {dimension_numbers = #tpu.dot_dimension_numbers<[1], [0], [0], [1], [0, 0, 1, 1], [], []>} : vector<2x32xf32>, vector<32x32xf32>, vector<2x32xf32> -> vector<2x32xf32>
    %147 = vector.broadcast %4 : vector<1x32xf32> to vector<2x32xf32>
    %148 = arith.addf %146, %147 : vector<2x32xf32>
    %cst_43 = arith.constant 0.000000e+00 : f32
    %149 = vector.broadcast %cst_43 : f32 to vector<2x32xf32>
    %150 = arith.maximumf %148, %149 : vector<2x32xf32>
    %c0_44 = arith.constant 0 : index
    %c0_45 = arith.constant 0 : index
    %151 = vector.load %arg9[%c0_44, %c0_45] : memref<32x1xf32, #tpu.memory_space<vmem>>, vector<32x1xf32>
    %cst_46 = arith.constant dense<0.000000e+00> : vector<2x1xf32>
    %152 = tpu.matmul %150, %151, %cst_46 {dimension_numbers = #tpu.dot_dimension_numbers<[1], [0], [0], [1], [0, 0, 1, 1], [], []>} : vector<2x32xf32>, vector<32x1xf32>, vector<2x1xf32> -> vector<2x1xf32>
    %153 = vector.broadcast %5 : vector<1x1xf32> to vector<2x1xf32>
    %154 = arith.addf %152, %153 : vector<2x1xf32>
    %c0_47 = arith.constant 0 : index
    %c0_48 = arith.constant 0 : index
    %155 = vector.load %arg11[%c0_47, %c0_48] : memref<2x1xf32, #tpu.memory_space<vmem>>, vector<2x1xf32>
    tpu.vector_store %arg11[%c0_47, %c0_48], %154 {strides = array<i32>} : memref<2x1xf32, #tpu.memory_space<vmem>>, vector<2x1xf32>,
    return
  }
}

</mosaic_0001>

<llo_original>
// kernel: value_network2_forward.1
$region0: #{value_network2_forward.1}
  #allocation0 [shape = 'u32[]', space=smem, size = 0x4, offset = 0x4, fixed_abs, tag = 'smem constant byte address 0x4 - core index']
  #allocation1 [shape = 'u32[72,128]{1,0:T(1,128)}', space=vmem, size = 0x9000, scoped, tag = 'internal scratch']
  %s0 = inlined_call_operand.vmem [shape: f32[10,13], index: 0, kind: input, shape index: {}]
  %s1 = inlined_call_operand.vmem [shape: f32[2,6], index: 1, kind: input, shape index: {}]
  %s2 = inlined_call_operand.vmem [shape: f32[13,32], index: 2, kind: input, shape index: {}]
  %s3 = inlined_call_operand.vmem [shape: f32[32,32], index: 3, kind: input, shape index: {}]
  %s4 = inlined_call_operand.vmem [shape: f32[32,128], index: 4, kind: input, shape index: {}]
  %s5 = inlined_call_operand.hbm [shape: f32[32,128], index: 5, kind: input, shape index: {}]
  %s6 = inlined_call_operand.vmem [shape: f32[6,32], index: 6, kind: input, shape index: {}]
  %s7 = inlined_call_operand.hbm [shape: f32[32,32], index: 7, kind: input, shape index: {}]
  %s8 = inlined_call_operand.hbm [shape: f32[32,32], index: 8, kind: input, shape index: {}]
  %s9 = inlined_call_operand.vmem [shape: f32[32,1], index: 9, kind: input, shape index: {}]
  %s10 = inlined_call_operand.hbm [shape: f32[6,128], index: 10, kind: input, shape index: {}]
  %s11 = inlined_call_operand.vmem [shape: f32[2,1], index: 11, kind: output, shape index: {}]
  %s12 = sld [smem:[#allocation0]]
  $region70: #{value_network2_forward.1} parent=0
    _
  %s14 = ssub.s32 1, %s12
  %s15 = scalar_select 0, %s14, %s12
  $region1: #{value_network2_forward.1} parent=0
    #allocation2 [shape = 'u8[16384]{0}', space=vmem, size = 0x4000, scoped, tag = 'input window, operand 5, single buffered']
    #allocation3 [shape = 's32[1]{0}', space=sflag, size = 0x4, scoped, tag = 'scoped memory for value_network2_forward.1']
    #allocation4 [shape = 'u8[16384]{0}', space=vmem, size = 0x4000, scoped, tag = 'input window, operand 7, single buffered']
    #allocation5 [shape = 's32[1]{0}', space=sflag, size = 0x4, scoped, tag = 'scoped memory for value_network2_forward.1']
    #allocation6 [shape = 'u8[16384]{0}', space=vmem, size = 0x4000, scoped, tag = 'input window, operand 8, single buffered']
    #allocation7 [shape = 'u8[4096]{0}', space=vmem, size = 0x1000, scoped, tag = 'input window, operand 10, single buffered']
    #allocation8 [shape = 's32[1]{0}', space=sflag, size = 0x4, scoped, tag = 'scoped memory for value_network2_forward.1']
    %16 = vsyncpa [#allocation3], 0
    %17 = vsyncpa [#allocation5], 0
    %18 = vsyncpa [#allocation8], 0
    // Predicated region
    $region2: #{value_network2_forward.1} parent=1 // pred_check
      _
    $region3: #{value_network2_forward.1} parent=1 // pred_check_branch
      %20 = sbr.rel (0) target = $region5
    $region4: #{value_network2_forward.1} parent=1 // pred_region
      _
    $region5: #{value_network2_forward.1} parent=1 // pred_fallthru
      _
    // Predicated region
    $region6: #{value_network2_forward.1} parent=1 // pred_check
      _
    $region7: #{value_network2_forward.1} parent=1 // pred_check_branch
      %22 = sbr.rel (0) target = $region9
    $region8: #{value_network2_forward.1} parent=1 // pred_region
      _
    $region9: #{value_network2_forward.1} parent=1 // pred_fallthru
      _
    // Predicated region
    $region10: #{value_network2_forward.1} parent=1 // pred_check
      _
    $region11: #{value_network2_forward.1} parent=1 // pred_check_branch
      %24 = sbr.rel (0) target = $region13
    $region12: #{value_network2_forward.1} parent=1 // pred_region
      _
    $region13: #{value_network2_forward.1} parent=1 // pred_fallthru
      _
    // Predicated region
    $region14: #{value_network2_forward.1} parent=1 // pred_check
      _
    $region15: #{value_network2_forward.1} parent=1 // pred_check_branch
      %26 = sbr.rel (0) target = $region17
    $region16: #{value_network2_forward.1} parent=1 // pred_region
      _
    $region17: #{value_network2_forward.1} parent=1 // pred_fallthru
      _
    // Predicated region
    $region18: #{value_network2_forward.1} parent=1 // pred_check
      _
    $region19: #{value_network2_forward.1} parent=1 // pred_check_branch
      %28 = sbr.rel (0) target = $region21
    $region20: #{value_network2_forward.1} parent=1 // pred_region
      _
    $region21: #{value_network2_forward.1} parent=1 // pred_fallthru
      _
    // Predicated region
    $region22: #{value_network2_forward.1} parent=1 // pred_check
      _
    $region23: #{value_network2_forward.1} parent=1 // pred_check_branch
      %30 = sbr.rel (0) target = $region25
    $region24: #{value_network2_forward.1} parent=1 // pred_region
      %32 = vsyncadd [#allocation3], 0
      %s33 = sshll.u32 %s5, 4
      %s34 = int_to_ptr.hbm [resolvable:$true] %s33
      %s35 = sshll.u32 [#allocation2], 4
      %s36 = int_to_ptr.vmem [resolvable:$true] %s35
      %41 = dma.hbm_to_vmem [thread:$0]  %s34, 512, %s36, [#allocation3], 128, 128, 8
    $region25: #{value_network2_forward.1} parent=1 // pred_fallthru
      _
    // Predicated region
    $region26: #{value_network2_forward.1} parent=1 // pred_check
      _
    $region27: #{value_network2_forward.1} parent=1 // pred_check_branch
      %43 = sbr.rel (0) target = $region29
    $region28: #{value_network2_forward.1} parent=1 // pred_region
      _
    $region29: #{value_network2_forward.1} parent=1 // pred_fallthru
      _
    // Predicated region
    $region30: #{value_network2_forward.1} parent=1 // pred_check
      _
    $region31: #{value_network2_forward.1} parent=1 // pred_check_branch
      %45 = sbr.rel (0) target = $region33
    $region32: #{value_network2_forward.1} parent=1 // pred_region
      %47 = vsyncadd [#allocation5], 0
      %s48 = sshll.u32 %s7, 4
      %s49 = int_to_ptr.hbm [resolvable:$true] %s48
      %s50 = sshll.u32 [#allocation4], 4
      %s51 = int_to_ptr.vmem [resolvable:$true] %s50
      %56 = dma.hbm_to_vmem [thread:$0]  %s49, 512, %s51, [#allocation5], 128, 128, 8
    $region33: #{value_network2_forward.1} parent=1 // pred_fallthru
      _
    // Predicated region
    $region34: #{value_network2_forward.1} parent=1 // pred_check
      _
    $region35: #{value_network2_forward.1} parent=1 // pred_check_branch
      %58 = sbr.rel (0) target = $region37
    $region36: #{value_network2_forward.1} parent=1 // pred_region
      %60 = vsyncadd [#allocation5], 0
      %s61 = sshll.u32 %s8, 4
      %s62 = int_to_ptr.hbm [resolvable:$true] %s61
      %s63 = sshll.u32 [#allocation6], 4
      %s64 = int_to_ptr.vmem [resolvable:$true] %s63
      %69 = dma.hbm_to_vmem [thread:$0]  %s62, 512, %s64, [#allocation5], 128, 128, 8
    $region37: #{value_network2_forward.1} parent=1 // pred_fallthru
      _
    // Predicated region
    $region38: #{value_network2_forward.1} parent=1 // pred_check
      _
    $region39: #{value_network2_forward.1} parent=1 // pred_check_branch
      %71 = sbr.rel (0) target = $region41
    $region40: #{value_network2_forward.1} parent=1 // pred_region
      _
    $region41: #{value_network2_forward.1} parent=1 // pred_fallthru
      _
    // Predicated region
    $region42: #{value_network2_forward.1} parent=1 // pred_check
      _
    $region43: #{value_network2_forward.1} parent=1 // pred_check_branch
      %73 = sbr.rel (0) target = $region45
    $region44: #{value_network2_forward.1} parent=1 // pred_region
      %75 = vsyncadd [#allocation8], 0
      %s77 = sshll.u32 %s10, 4
      %s78 = int_to_ptr.hbm [resolvable:$true] %s77
      %s79 = sshll.u32 [#allocation7], 4
      %s80 = int_to_ptr.vmem [resolvable:$true] %s79
      %82 = dma.hbm_to_vmem [thread:$0]  %s78, 128, %s80, [#allocation8]
    $region45: #{value_network2_forward.1} parent=1 // pred_fallthru
      _
    // Predicated region
    $region46: #{value_network2_forward.1} parent=1 // pred_check
      _
    $region47: #{value_network2_forward.1} parent=1 // pred_check_branch
      %84 = sbr.rel (0) target = $region49
    $region48: #{value_network2_forward.1} parent=1 // pred_region
      %86 = dma.done [#allocation3], 512
    $region49: #{value_network2_forward.1} parent=1 // pred_fallthru
      _
    // Predicated region
    $region50: #{value_network2_forward.1} parent=1 // pred_check
      _
    $region51: #{value_network2_forward.1} parent=1 // pred_check_branch
      %88 = sbr.rel (0) target = $region53
    $region52: #{value_network2_forward.1} parent=1 // pred_region
      %90 = dma.done [#allocation5], 512
    $region53: #{value_network2_forward.1} parent=1 // pred_fallthru
      _
    // Predicated region
    $region54: #{value_network2_forward.1} parent=1 // pred_check
      _
    $region55: #{value_network2_forward.1} parent=1 // pred_check_branch
      %92 = sbr.rel (0) target = $region57
    $region56: #{value_network2_forward.1} parent=1 // pred_region
      %94 = dma.done [#allocation5], 512
    $region57: #{value_network2_forward.1} parent=1 // pred_fallthru
      _
    // Predicated region
    $region58: #{value_network2_forward.1} parent=1 // pred_check
      _
    $region59: #{value_network2_forward.1} parent=1 // pred_check_branch
      %96 = sbr.rel (0) target = $region61
    $region60: #{value_network2_forward.1} parent=1 // pred_region
      %98 = dma.done [#allocation8], 128
    $region61: #{value_network2_forward.1} parent=1 // pred_fallthru
      _
    %v99 = vld [vmem:[#allocation7] sm:$0x1]
    %v100 = vld [vmem:[#allocation7 + $0x1] sm:$0x1]
    %v101 = vld [vmem:[#allocation7 + $0x2] sm:$0x1]
    %v102 = vld [vmem:[#allocation7 + $0x3] sm:$0x1]
    %v103 = vld [vmem:[#allocation7 + $0x4] sm:$0x1]
    %v104 = vld [vmem:[#allocation7 + $0x5] sm:$0x1]
    %v105 = vld [vmem:[%s0] sm:$0xff]
    %v106 = vld [vmem:[%s0 + $0x8] sm:$0x3]
    %v107 = vld [vmem:[%s2] sm:$0xff]
    %v108 = vld [vmem:[%s2 + $0x8] sm:$0x1f]
    %v109 = vperm.slane %v99, 0
    %vm110 = vcmask 105472
    %v112 = vsel %vm110, %v105, 0
    %v115 = vsel %vm110, %v106, 0
    %vm117 = vcmask 1044480
    %v119 = vsel %vm117, %v108, 0
    %121 = vmatpush.msra.mxu0 0.0
    %122 = vmatpush.msra.mxu0 0.0
    %123 = vmatpush.msra.mxu0 0.0
    %124 = vmatpush.msra.mxu0 0.0
    %125 = vmatpush.msra.mxu0 0.0
    %126 = vmatpush.msra.mxu0 0.0
    %127 = vmatpush.msra.mxu0 0.0
    %128 = vmatpush.msra.mxu0 0.0
    %129 = vmatpush.msra.mxu0 0.0
    %130 = vmatpush.msra.mxu0 0.0
    %131 = vmatpush.msra.mxu0 0.0
    %132 = vmatpush.msra.mxu0 0.0
    %133 = vmatpush.msra.mxu0 0.0
    %134 = vmatpush.msra.mxu0 0.0
    %135 = vmatpush.msra.mxu0 %v119
    %136 = vmatpush.msra.mxu0 %v107
    %137 = vmatmul.f32.gmra.mxu0 %v112
    %v138 = vpop.f32.mrf.mxu0
    %v139 = vadd.f32 %v109, %v138
    %140 = vmatmul.f32.gmra.mxu0 %v115
    %v141 = vpop.f32.mrf.mxu0
    %v142 = vadd.f32 %v109, %v141
    %143 = vdwg.mxu0
    %v144 = vmax.f32 %v139, 0.0
    %v145 = vmax.f32 %v142, 0.0
    %v146 = vld [vmem:[%s3] sm:$0xff]
    %v147 = vld [vmem:[%s3 + $0x8] sm:$0xff]
    %v148 = vld [vmem:[%s3 + $0x10] sm:$0xff]
    %v149 = vld [vmem:[%s3 + $0x18] sm:$0xff]
    %v150 = vperm.slane %v100, 0
    %vm151 = vcmask 261120
    %v153 = vsel %vm151, %v144, 0
    %v156 = vsel %vm151, %v145, 0
    %158 = vmatpush.msra.mxu0 0.0
    %159 = vmatpush.msra.mxu0 0.0
    %160 = vmatpush.msra.mxu0 0.0
    %161 = vmatpush.msra.mxu0 0.0
    %162 = vmatpush.msra.mxu0 0.0
    %163 = vmatpush.msra.mxu0 0.0
    %164 = vmatpush.msra.mxu0 0.0
    %165 = vmatpush.msra.mxu0 0.0
    %166 = vmatpush.msra.mxu0 0.0
    %167 = vmatpush.msra.mxu0 0.0
    %168 = vmatpush.msra.mxu0 0.0
    %169 = vmatpush.msra.mxu0 0.0
    %170 = vmatpush.msra.mxu0 %v149
    %171 = vmatpush.msra.mxu0 %v148
    %172 = vmatpush.msra.mxu0 %v147
    %173 = vmatpush.msra.mxu0 %v146
    %174 = vmatmul.f32.gmra.mxu0 %v153
    %v175 = vpop.f32.mrf.mxu0
    %v176 = vadd.f32 %v150, %v175
    %177 = vmatmul.f32.gmra.mxu0 %v156
    %v178 = vpop.f32.mrf.mxu0
    %v179 = vadd.f32 %v150, %v178
    %180 = vdwg.mxu0
    %v181 = vld [vmem:[%s4] sm:$0xff]
    %v182 = vld [vmem:[%s4 + $0x8] sm:$0xff]
    %v183 = vld [vmem:[%s4 + $0x10] sm:$0xff]
    %v184 = vld [vmem:[%s4 + $0x18] sm:$0xff]
    %v185 = vperm.slane %v101, 0
    %v187 = vsel %vm151, %v176, 0
    %v190 = vsel %vm151, %v179, 0
    %192 = vmatpush.msra.mxu0 0.0
    %193 = vmatpush.msra.mxu0 0.0
    %194 = vmatpush.msra.mxu0 0.0
    %195 = vmatpush.msra.mxu0 0.0
    %196 = vmatpush.msra.mxu0 0.0
    %197 = vmatpush.msra.mxu0 0.0
    %198 = vmatpush.msra.mxu0 0.0
    %199 = vmatpush.msra.mxu0 0.0
    %200 = vmatpush.msra.mxu0 0.0
    %201 = vmatpush.msra.mxu0 0.0
    %202 = vmatpush.msra.mxu0 0.0
    %203 = vmatpush.msra.mxu0 0.0
    %204 = vmatpush.msra.mxu0 %v184
    %205 = vmatpush.msra.mxu0 %v183
    %206 = vmatpush.msra.mxu0 %v182
    %207 = vmatpush.msra.mxu0 %v181
    %208 = vmatmul.f32.gmra.mxu0 %v187
    %v209 = vpop.f32.mrf.mxu0
    %v210 = vadd.f32 %v185, %v209
    %211 = vmatmul.f32.gmra.mxu0 %v190
    %v212 = vpop.f32.mrf.mxu0
    %v213 = vadd.f32 %v185, %v212
    %214 = vdwg.mxu0
    %v216 = vrot.slane %v210, 4
    %vm218 = vcmask 1040384
    %v219 = vsel %vm218, %v210, %v216
    %v220 = vrot.slane %v210, 1
    %v222 = vrot.slane %v210, 5
    %v224 = vsel %vm218, %v220, %v222
    %v225 = vrot.slane %v210, 2
    %v227 = vrot.slane %v210, 6
    %v229 = vsel %vm218, %v225, %v227
    %v230 = vrot.slane %v210, 3
    %v233 = vrot.slane %v213, 7
    %v235 = vsel %vm218, %v230, %v233
    %v236 = vsel %vm218, %v216, %v213
    %v237 = vlaneseq
    %v238 = vand.u32 %v237, 127
    %vm239 = vcmp.ge.s32.totalorder %v238, 64
    %vm240 = vcmp.lt.s32.totalorder %v238, 96
    %vm241 = vmand %vm239, %vm240
    %v242 = vld [vmem:[#allocation2] sm:$0xff]
    %v243 = vld [vmem:[#allocation2 + $0x8] sm:$0xff]
    %v244 = vld [vmem:[#allocation2 + $0x10] sm:$0xff]
    %v245 = vld [vmem:[#allocation2 + $0x18] sm:$0xff]
    %v247 = vsel %vm151, 0.0, 0
    %249 = vmatpush.msra.mxu0 0.0
    %250 = vmatpush.msra.mxu0 0.0
    %251 = vmatpush.msra.mxu0 0.0
    %252 = vmatpush.msra.mxu0 0.0
    %253 = vmatpush.msra.mxu0 0.0
    %254 = vmatpush.msra.mxu0 0.0
    %255 = vmatpush.msra.mxu0 0.0
    %256 = vmatpush.msra.mxu0 0.0
    %257 = vmatpush.msra.mxu0 0.0
    %258 = vmatpush.msra.mxu0 0.0
    %259 = vmatpush.msra.mxu0 0.0
    %260 = vmatpush.msra.mxu0 0.0
    %261 = vmatpush.msra.mxu0 %v245
    %262 = vmatpush.msra.mxu0 %v244
    %263 = vmatpush.msra.mxu0 %v243
    %264 = vmatpush.msra.mxu0 %v242
    %265 = vmatmul.f32.gmra.mxu0 %v247
    %v266 = vpop.f32.mrf.mxu0
    %v267 = vadd.f32 0.0, %v266
    %268 = vdwg.mxu0
    %v269 = vadd.f32 %v219, %v267
    %v270 = vtanh.pop %v269
    %v271 = vxor.u32 %v269, 2147483648
    %v272 = vmul.f32 %v271, 1.442695
    %v273 = vpow.pop %v272
    %v274 = vadd.f32 %v273, 1.0
    %v275 = vrcp.pop %v274
    %v276 = vmul.f32 %v274, %v275
    %v277 = vsub.f32 1.0, %v276
    %v278 = vmul.f32 %v275, %v277
    %v279 = vadd.f32 %v275, %v278
    %vm280 = vweird.f32 %v274
    %vm281 = vweird.f32 %v275
    %vm282 = vmor %vm280, %vm281
    %v283 = vsel %vm282, %v275, %v279
    %v284 = vand.u32 2147483647, %v274
    %vm285 = vcmp.eq.f32.partialorder %v284, 8.507059e+37
    %v286 = vand.u32 %v274, 2147483648
    %v287 = vor.u32 1.1754944e-38, %v286
    %v288 = vsel %vm285, %v287, %v283
    %v289 = vmul.f32 1.0, %v288
    %v290 = vsel %vm241, %v270, %v289
    %v291 = vmul.f32 %v290, 0.0
    %293 = vrot.lane.b32.xlu0 %v290, 64
    %v294 = vpop.permute.xlu0 %293
    %v296 = vmul.f32 %v290, %v294
    %298 = vrot.lane.b32.xlu0 %v296, 32
    %v299 = vpop.permute.xlu0 %298
    %v301 = vadd.f32 %v291, %v299
    %v302 = vtanh.pop %v301
    %304 = vrot.lane.b32.xlu0 %v302, 64
    %v305 = vpop.permute.xlu0 %304
    %v307 = vmul.f32 %v290, %v305
    %309 = vrot.lane.b32.xlu0 %v307, 32
    %v310 = vpop.permute.xlu0 %309
    %v311 = vsel %vm151, %v310, 0
    %313 = vmatpush.msra.mxu0 0.0
    %314 = vmatpush.msra.mxu0 0.0
    %315 = vmatpush.msra.mxu0 0.0
    %316 = vmatpush.msra.mxu0 0.0
    %317 = vmatpush.msra.mxu0 0.0
    %318 = vmatpush.msra.mxu0 0.0
    %319 = vmatpush.msra.mxu0 0.0
    %320 = vmatpush.msra.mxu0 0.0
    %321 = vmatpush.msra.mxu0 0.0
    %322 = vmatpush.msra.mxu0 0.0
    %323 = vmatpush.msra.mxu0 0.0
    %324 = vmatpush.msra.mxu0 0.0
    %325 = vmatpush.msra.mxu0 %v245
    %326 = vmatpush.msra.mxu0 %v244
    %327 = vmatpush.msra.mxu0 %v243
    %328 = vmatpush.msra.mxu0 %v242
    %329 = vmatmul.f32.gmra.mxu0 %v311
    %v330 = vpop.f32.mrf.mxu0
    %v331 = vadd.f32 0.0, %v330
    %332 = vdwg.mxu0
    %v333 = vadd.f32 %v224, %v331
    %v334 = vtanh.pop %v333
    %v335 = vxor.u32 %v333, 2147483648
    %v336 = vmul.f32 %v335, 1.442695
    %v337 = vpow.pop %v336
    %v338 = vadd.f32 %v337, 1.0
    %v339 = vrcp.pop %v338
    %v340 = vmul.f32 %v338, %v339
    %v341 = vsub.f32 1.0, %v340
    %v342 = vmul.f32 %v339, %v341
    %v343 = vadd.f32 %v339, %v342
    %vm344 = vweird.f32 %v338
    %vm345 = vweird.f32 %v339
    %vm346 = vmor %vm344, %vm345
    %v347 = vsel %vm346, %v339, %v343
    %v348 = vand.u32 2147483647, %v338
    %vm349 = vcmp.eq.f32.partialorder %v348, 8.507059e+37
    %v350 = vand.u32 %v338, 2147483648
    %v351 = vor.u32 1.1754944e-38, %v350
    %v352 = vsel %vm349, %v351, %v347
    %v353 = vmul.f32 1.0, %v352
    %v354 = vsel %vm241, %v334, %v353
    %v355 = vmul.f32 %v354, %v301
    %357 = vrot.lane.b32.xlu0 %v354, 64
    %v358 = vpop.permute.xlu0 %357
    %v360 = vmul.f32 %v354, %v358
    %362 = vrot.lane.b32.xlu0 %v360, 32
    %v363 = vpop.permute.xlu0 %362
    %v365 = vadd.f32 %v355, %v363
    %v366 = vtanh.pop %v365
    %368 = vrot.lane.b32.xlu0 %v366, 64
    %v369 = vpop.permute.xlu0 %368
    %v371 = vmul.f32 %v354, %v369
    %373 = vrot.lane.b32.xlu0 %v371, 32
    %v374 = vpop.permute.xlu0 %373
    %v375 = vsel %vm151, %v374, 0
    %377 = vmatpush.msra.mxu0 0.0
    %378 = vmatpush.msra.mxu0 0.0
    %379 = vmatpush.msra.mxu0 0.0
    %380 = vmatpush.msra.mxu0 0.0
    %381 = vmatpush.msra.mxu0 0.0
    %382 = vmatpush.msra.mxu0 0.0
    %383 = vmatpush.msra.mxu0 0.0
    %384 = vmatpush.msra.mxu0 0.0
    %385 = vmatpush.msra.mxu0 0.0
    %386 = vmatpush.msra.mxu0 0.0
    %387 = vmatpush.msra.mxu0 0.0
    %388 = vmatpush.msra.mxu0 0.0
    %389 = vmatpush.msra.mxu0 %v245
    %390 = vmatpush.msra.mxu0 %v244
    %391 = vmatpush.msra.mxu0 %v243
    %392 = vmatpush.msra.mxu0 %v242
    %393 = vmatmul.f32.gmra.mxu0 %v375
    %v394 = vpop.f32.mrf.mxu0
    %v395 = vadd.f32 0.0, %v394
    %396 = vdwg.mxu0
    %v397 = vadd.f32 %v229, %v395
    %v398 = vtanh.pop %v397
    %v399 = vxor.u32 %v397, 2147483648
    %v400 = vmul.f32 %v399, 1.442695
    %v401 = vpow.pop %v400
    %v402 = vadd.f32 %v401, 1.0
    %v403 = vrcp.pop %v402
    %v404 = vmul.f32 %v402, %v403
    %v405 = vsub.f32 1.0, %v404
    %v406 = vmul.f32 %v403, %v405
    %v407 = vadd.f32 %v403, %v406
    %vm408 = vweird.f32 %v402
    %vm409 = vweird.f32 %v403
    %vm410 = vmor %vm408, %vm409
    %v411 = vsel %vm410, %v403, %v407
    %v412 = vand.u32 2147483647, %v402
    %vm413 = vcmp.eq.f32.partialorder %v412, 8.507059e+37
    %v414 = vand.u32 %v402, 2147483648
    %v415 = vor.u32 1.1754944e-38, %v414
    %v416 = vsel %vm413, %v415, %v411
    %v417 = vmul.f32 1.0, %v416
    %v418 = vsel %vm241, %v398, %v417
    %v419 = vmul.f32 %v418, %v365
    %421 = vrot.lane.b32.xlu0 %v418, 64
    %v422 = vpop.permute.xlu0 %421
    %v424 = vmul.f32 %v418, %v422
    %426 = vrot.lane.b32.xlu0 %v424, 32
    %v427 = vpop.permute.xlu0 %426
    %v429 = vadd.f32 %v419, %v427
    %v430 = vtanh.pop %v429
    %432 = vrot.lane.b32.xlu0 %v430, 64
    %v433 = vpop.permute.xlu0 %432
    %v435 = vmul.f32 %v418, %v433
    %437 = vrot.lane.b32.xlu0 %v435, 32
    %v438 = vpop.permute.xlu0 %437
    %v439 = vsel %vm151, %v438, 0
    %441 = vmatpush.msra.mxu0 0.0
    %442 = vmatpush.msra.mxu0 0.0
    %443 = vmatpush.msra.mxu0 0.0
    %444 = vmatpush.msra.mxu0 0.0
    %445 = vmatpush.msra.mxu0 0.0
    %446 = vmatpush.msra.mxu0 0.0
    %447 = vmatpush.msra.mxu0 0.0
    %448 = vmatpush.msra.mxu0 0.0
    %449 = vmatpush.msra.mxu0 0.0
    %450 = vmatpush.msra.mxu0 0.0
    %451 = vmatpush.msra.mxu0 0.0
    %452 = vmatpush.msra.mxu0 0.0
    %453 = vmatpush.msra.mxu0 %v245
    %454 = vmatpush.msra.mxu0 %v244
    %455 = vmatpush.msra.mxu0 %v243
    %456 = vmatpush.msra.mxu0 %v242
    %457 = vmatmul.f32.gmra.mxu0 %v439
    %v458 = vpop.f32.mrf.mxu0
    %v459 = vadd.f32 0.0, %v458
    %460 = vdwg.mxu0
    %v461 = vadd.f32 %v235, %v459
    %v462 = vtanh.pop %v461
    %v463 = vxor.u32 %v461, 2147483648
    %v464 = vmul.f32 %v463, 1.442695
    %v465 = vpow.pop %v464
    %v466 = vadd.f32 %v465, 1.0
    %v467 = vrcp.pop %v466
    %v468 = vmul.f32 %v466, %v467
    %v469 = vsub.f32 1.0, %v468
    %v470 = vmul.f32 %v467, %v469
    %v471 = vadd.f32 %v467, %v470
    %vm472 = vweird.f32 %v466
    %vm473 = vweird.f32 %v467
    %vm474 = vmor %vm472, %vm473
    %v475 = vsel %vm474, %v467, %v471
    %v476 = vand.u32 2147483647, %v466
    %vm477 = vcmp.eq.f32.partialorder %v476, 8.507059e+37
    %v478 = vand.u32 %v466, 2147483648
    %v479 = vor.u32 1.1754944e-38, %v478
    %v480 = vsel %vm477, %v479, %v475
    %v481 = vmul.f32 1.0, %v480
    %v482 = vsel %vm241, %v462, %v481
    %v483 = vmul.f32 %v482, %v429
    %485 = vrot.lane.b32.xlu0 %v482, 64
    %v486 = vpop.permute.xlu0 %485
    %v488 = vmul.f32 %v482, %v486
    %490 = vrot.lane.b32.xlu0 %v488, 32
    %v491 = vpop.permute.xlu0 %490
    %v493 = vadd.f32 %v483, %v491
    %v494 = vtanh.pop %v493
    %496 = vrot.lane.b32.xlu0 %v494, 64
    %v497 = vpop.permute.xlu0 %496
    %v499 = vmul.f32 %v482, %v497
    %501 = vrot.lane.b32.xlu0 %v499, 32
    %v502 = vpop.permute.xlu0 %501
    %v503 = vsel %vm151, %v502, 0
    %505 = vmatpush.msra.mxu0 0.0
    %506 = vmatpush.msra.mxu0 0.0
    %507 = vmatpush.msra.mxu0 0.0
    %508 = vmatpush.msra.mxu0 0.0
    %509 = vmatpush.msra.mxu0 0.0
    %510 = vmatpush.msra.mxu0 0.0
    %511 = vmatpush.msra.mxu0 0.0
    %512 = vmatpush.msra.mxu0 0.0
    %513 = vmatpush.msra.mxu0 0.0
    %514 = vmatpush.msra.mxu0 0.0
    %515 = vmatpush.msra.mxu0 0.0
    %516 = vmatpush.msra.mxu0 0.0
    %517 = vmatpush.msra.mxu0 %v245
    %518 = vmatpush.msra.mxu0 %v244
    %519 = vmatpush.msra.mxu0 %v243
    %520 = vmatpush.msra.mxu0 %v242
    %521 = vmatmul.f32.gmra.mxu0 %v503
    %v522 = vpop.f32.mrf.mxu0
    %v523 = vadd.f32 0.0, %v522
    %524 = vdwg.mxu0
    %v525 = vadd.f32 %v236, %v523
    %v526 = vtanh.pop %v525
    %v527 = vxor.u32 %v525, 2147483648
    %v528 = vmul.f32 %v527, 1.442695
    %v529 = vpow.pop %v528
    %v530 = vadd.f32 %v529, 1.0
    %v531 = vrcp.pop %v530
    %v532 = vmul.f32 %v530, %v531
    %v533 = vsub.f32 1.0, %v532
    %v534 = vmul.f32 %v531, %v533
    %v535 = vadd.f32 %v531, %v534
    %vm536 = vweird.f32 %v530
    %vm537 = vweird.f32 %v531
    %vm538 = vmor %vm536, %vm537
    %v539 = vsel %vm538, %v531, %v535
    %v540 = vand.u32 2147483647, %v530
    %vm541 = vcmp.eq.f32.partialorder %v540, 8.507059e+37
    %v542 = vand.u32 %v530, 2147483648
    %v543 = vor.u32 1.1754944e-38, %v542
    %v544 = vsel %vm541, %v543, %v539
    %v545 = vmul.f32 1.0, %v544
    %v546 = vsel %vm241, %v526, %v545
    %v547 = vmul.f32 %v546, %v493
    %549 = vrot.lane.b32.xlu0 %v546, 64
    %v550 = vpop.permute.xlu0 %549
    %v552 = vmul.f32 %v546, %v550
    %554 = vrot.lane.b32.xlu0 %v552, 32
    %v555 = vpop.permute.xlu0 %554
    %v557 = vadd.f32 %v547, %v555
    %v558 = vtanh.pop %v557
    %560 = vrot.lane.b32.xlu0 %v558, 64
    %v561 = vpop.permute.xlu0 %560
    %v563 = vmul.f32 %v546, %v561
    %v564 = vld [vmem:[%s1] sm:$0x3]
    %v565 = vld [vmem:[%s6] sm:$0x3f]
    %v566 = vld [vmem:[#allocation4] sm:$0xff]
    %v567 = vld [vmem:[#allocation4 + $0x8] sm:$0xff]
    %v568 = vld [vmem:[#allocation4 + $0x10] sm:$0xff]
    %v569 = vld [vmem:[#allocation4 + $0x18] sm:$0xff]
    %571 = vrot.lane.b32.xlu0 %v563, 32
    %v572 = vpop.permute.xlu0 %571
    %v573 = vsel %vm151, %v572, 0
    %575 = vmatpush.msra.mxu0 0.0
    %576 = vmatpush.msra.mxu0 0.0
    %577 = vmatpush.msra.mxu0 0.0
    %578 = vmatpush.msra.mxu0 0.0
    %579 = vmatpush.msra.mxu0 0.0
    %580 = vmatpush.msra.mxu0 0.0
    %581 = vmatpush.msra.mxu0 0.0
    %582 = vmatpush.msra.mxu0 0.0
    %583 = vmatpush.msra.mxu0 0.0
    %584 = vmatpush.msra.mxu0 0.0
    %585 = vmatpush.msra.mxu0 0.0
    %586 = vmatpush.msra.mxu0 0.0
    %587 = vmatpush.msra.mxu0 %v569
    %588 = vmatpush.msra.mxu0 %v568
    %589 = vmatpush.msra.mxu0 %v567
    %590 = vmatpush.msra.mxu0 %v566
    %591 = vmatmul.f32.gmra.mxu0 %v573
    %v592 = vpop.f32.mrf.mxu0
    %v593 = vadd.f32 0.0, %v592
    %594 = vdwg.mxu0
    %vm595 = vcmask 48128
    %v597 = vsel %vm595, %v564, 0
    %vm599 = vcmask 1045504
    %v601 = vsel %vm599, %v565, 0
    %603 = vmatpush.msra.mxu0 0.0
    %604 = vmatpush.msra.mxu0 0.0
    %605 = vmatpush.msra.mxu0 0.0
    %606 = vmatpush.msra.mxu0 0.0
    %607 = vmatpush.msra.mxu0 0.0
    %608 = vmatpush.msra.mxu0 0.0
    %609 = vmatpush.msra.mxu0 0.0
    %610 = vmatpush.msra.mxu0 0.0
    %611 = vmatpush.msra.mxu0 0.0
    %612 = vmatpush.msra.mxu0 0.0
    %613 = vmatpush.msra.mxu0 0.0
    %614 = vmatpush.msra.mxu0 0.0
    %615 = vmatpush.msra.mxu0 0.0
    %616 = vmatpush.msra.mxu0 0.0
    %617 = vmatpush.msra.mxu0 0.0
    %618 = vmatpush.msra.mxu0 %v601
    %619 = vmatmul.f32.gmra.mxu0 %v597
    %v620 = vpop.f32.mrf.mxu0
    %v621 = vadd.f32 %v593, %v620
    %622 = vdwg.mxu0
    %v623 = vperm.slane %v102, 0
    %v624 = vadd.f32 %v621, %v623
    %v625 = vmax.f32 %v624, 0.0
    %v626 = vld [vmem:[#allocation6] sm:$0xff]
    %v627 = vld [vmem:[#allocation6 + $0x8] sm:$0xff]
    %v628 = vld [vmem:[#allocation6 + $0x10] sm:$0xff]
    %v629 = vld [vmem:[#allocation6 + $0x18] sm:$0xff]
    %v630 = vperm.slane %v103, 0
    %v632 = vsel %vm151, %v625, 0
    %634 = vmatpush.msra.mxu0 0.0
    %635 = vmatpush.msra.mxu0 0.0
    %636 = vmatpush.msra.mxu0 0.0
    %637 = vmatpush.msra.mxu0 0.0
    %638 = vmatpush.msra.mxu0 0.0
    %639 = vmatpush.msra.mxu0 0.0
    %640 = vmatpush.msra.mxu0 0.0
    %641 = vmatpush.msra.mxu0 0.0
    %642 = vmatpush.msra.mxu0 0.0
    %643 = vmatpush.msra.mxu0 0.0
    %644 = vmatpush.msra.mxu0 0.0
    %645 = vmatpush.msra.mxu0 0.0
    %646 = vmatpush.msra.mxu0 %v629
    %647 = vmatpush.msra.mxu0 %v628
    %648 = vmatpush.msra.mxu0 %v627
    %649 = vmatpush.msra.mxu0 %v626
    %650 = vmatmul.f32.gmra.mxu0 %v632
    %v651 = vpop.f32.mrf.mxu0
    %v652 = vadd.f32 %v630, %v651
    %653 = vdwg.mxu0
    %v654 = vmax.f32 %v652, 0.0
    %v655 = vld [vmem:[%s9] sm:$0xff]
    %v656 = vld [vmem:[%s9 + $0x8] sm:$0xff]
    %v657 = vld [vmem:[%s9 + $0x10] sm:$0xff]
    %v658 = vld [vmem:[%s9 + $0x18] sm:$0xff]
    %v659 = vperm.slane %v104, 0
    %v661 = vsel %vm151, %v654, 0
    %663 = vmatpush.msra.mxu0 0.0
    %664 = vmatpush.msra.mxu0 0.0
    %665 = vmatpush.msra.mxu0 0.0
    %666 = vmatpush.msra.mxu0 0.0
    %667 = vmatpush.msra.mxu0 0.0
    %668 = vmatpush.msra.mxu0 0.0
    %669 = vmatpush.msra.mxu0 0.0
    %670 = vmatpush.msra.mxu0 0.0
    %671 = vmatpush.msra.mxu0 0.0
    %672 = vmatpush.msra.mxu0 0.0
    %673 = vmatpush.msra.mxu0 0.0
    %674 = vmatpush.msra.mxu0 0.0
    %675 = vmatpush.msra.mxu0 %v658
    %676 = vmatpush.msra.mxu0 %v657
    %677 = vmatpush.msra.mxu0 %v656
    %678 = vmatpush.msra.mxu0 %v655
    %679 = vmatmul.f32.gmra.mxu0 %v661
    %v680 = vpop.f32.mrf.mxu0
    %v681 = vadd.f32 %v659, %v680
    %682 = vdwg.mxu0
    %vm683 = vcmask 1024
    %684 = vst.msk [vmem:[%s11] sm:$0x3] %vm683, %v681
    // Predicated region
    $region62: #{value_network2_forward.1} parent=1 // pred_check
      _
    $region63: #{value_network2_forward.1} parent=1 // pred_check_branch
      %686 = sbr.rel (0) target = $region65
    $region64: #{value_network2_forward.1} parent=1 // pred_region
      _
    $region65: #{value_network2_forward.1} parent=1 // pred_fallthru
      _
    // Predicated region
    $region66: #{value_network2_forward.1} parent=1 // pred_check
      _
    $region67: #{value_network2_forward.1} parent=1 // pred_check_branch
      %688 = sbr.rel (0) target = $region69
    $region68: #{value_network2_forward.1} parent=1 // pred_region
      _
    $region69: #{value_network2_forward.1} parent=1 // pred_fallthru
      _
    %689 = vsyncpa [#allocation3], 1
    %690 = vsyncpa [#allocation5], 1
    %691 = vsyncpa [#allocation8], 1

</llo_original>
